<compile_context>
chip_gen: v5e
topology: v5e:2x2
jax: 0.10.0
libtpu: 0.0.40
codegen_flags: <defaults>
</compile_context>

<pallas_src>
import jax
import jax.numpy as jnp
from jax import lax
from jax.experimental import pallas as pl
from jax.experimental.pallas import tpu as pltpu

d_model = 64
D_IN = d_model * 2   # 128
D_H1 = 512
D_H2 = 32
D_OUT = 2
OUT_PAD = 128        # pad last layer to a full lane width for unmasked stores


def _round_up(x, m):
    return (x + m - 1) // m * m


def _mlp_kernel(x_ref, w1_ref, b1_ref, w2_ref, b2_ref, w3_ref, b3_ref, o_ref):
    # x: (TM, 128); weights in (in, out) layout; biases as (1, out) rows.
    x = x_ref[...]
    h = jnp.dot(x, w1_ref[...], preferred_element_type=jnp.float32) + b1_ref[...]
    h = jnp.maximum(h, 0.0)
    h = jnp.dot(h, w2_ref[...], preferred_element_type=jnp.float32) + b2_ref[...]
    h = jnp.maximum(h, 0.0)
    o = jnp.dot(h, w3_ref[...], preferred_element_type=jnp.float32) + b3_ref[...]
    o_ref[...] = o.astype(o_ref.dtype)


def mlp_forward(x, w1, b1, w2, b2, w3, b3, *, block_rows=256):
    """x: (N, 128); w1:(128,512) w2:(512,32) w3:(32,2) in (in,out) layout."""
    N, d_in = x.shape
    assert d_in == D_IN

    # Zero-pad the last layer to 128 lanes (lane-dense output store).
    w3p = jnp.zeros((D_H2, OUT_PAD), x.dtype).at[:, :D_OUT].set(w3)
    b3p = jnp.zeros((OUT_PAD,), x.dtype).at[:D_OUT].set(b3)

    # Row tiling: one grid step for small N, otherwise 256-row parallel tiles.
    tm = min(block_rows, _round_up(N, 8))
    n_pad = _round_up(N, tm)
    if n_pad != N:
        x = jnp.pad(x, ((0, n_pad - N), (0, 0)))
    grid = (n_pad // tm,)

    b1r = b1.reshape(1, D_H1)
    b2r = b2.reshape(1, D_H2)
    b3r = b3p.reshape(1, OUT_PAD)

    rep = lambda i: (0, 0)   # weights / biases: same full block every step
    row = lambda i: (i, 0)   # activations: tile over rows only

    out = pl.pallas_call(
        _mlp_kernel,
        out_shape=jax.ShapeDtypeStruct((n_pad, OUT_PAD), jnp.float32),
        grid_spec=pltpu.PrefetchScalarGridSpec(
            num_scalar_prefetch=0,
            grid=grid,
            in_specs=[
                pl.BlockSpec((tm, D_IN), row),
                pl.BlockSpec((D_IN, D_H1), rep),
                pl.BlockSpec((1, D_H1), rep),
                pl.BlockSpec((D_H1, D_H2), rep),
                pl.BlockSpec((1, D_H2), rep),
                pl.BlockSpec((D_H2, OUT_PAD), rep),
                pl.BlockSpec((1, OUT_PAD), rep),
            ],
            out_specs=pl.BlockSpec((tm, OUT_PAD), row),
        ),
        compiler_params=pltpu.CompilerParams(
            dimension_semantics=("parallel",),
        ),
    )(x, w1, b1r, w2, b2r, w3p, b3r)

    # Drop row padding and the 126 zero-padded output columns.
    return out[:N, :D_OUT]


def _reference(x, w1, b1, w2, b2, w3, b3):
    p = lax.Precision.HIGHEST
    h = jnp.maximum(jnp.dot(x, w1, precision=p) + b1, 0.0)
    h = jnp.maximum(jnp.dot(h, w2, precision=p) + b2, 0.0)
    return jnp.dot(h, w3, precision=p) + b3


if __name__ == "__main__":
    key = jax.random.PRNGKey(0)
    kx, k1, kb1, k2, kb2, k3, kb3 = jax.random.split(key, 7)

    N = 16  # small batch
    x = jax.random.normal(kx, (N, D_IN), dtype=jnp.float32)

    # Parameters in (in, out) layout (== torch Linear weight transposed),
    # with kaiming / xavier-like scales.
    w1 = jax.random.normal(k1, (D_IN, D_H1), jnp.float32) * (2.0 / D_IN) ** 0.5
    b1 = jax.random.normal(kb1, (D_H1,), jnp.float32) * 0.01
    w2 = jax.random.normal(k2, (D_H1, D_H2), jnp.float32) * (2.0 / D_H1) ** 0.5
    b2 = jax.random.normal(kb2, (D_H2,), jnp.float32) * 0.01
    w3 = jax.random.normal(k3, (D_H2, D_OUT), jnp.float32) * (1.0 / D_H2) ** 0.5
    b3 = jax.random.normal(kb3, (D_OUT,), jnp.float32) * 0.01

    y = mlp_forward(x, w1, b1, w2, b2, w3, b3)
    jax.block_until_ready(y)

    y_ref = _reference(x, w1, b1, w2, b2, w3, b3)
    assert y.shape == (N, D_OUT)
    max_err = float(jnp.max(jnp.abs(y - y_ref)))
    assert jnp.allclose(y, y_ref, atol=1e-4, rtol=1e-4), max_err

    print("KERNEL_OK")
</pallas_src>

<mosaic_0001>
module attributes {stable_mosaic.version = 11 : i64} {
  func.func @_mlp_kernel(%arg0: i32, %arg1: memref<16x128xf32, #tpu.memory_space<vmem>>, %arg2: memref<128x512xf32, #tpu.memory_space<vmem>>, %arg3: memref<1x512xf32, #tpu.memory_space<vmem>>, %arg4: memref<512x32xf32, #tpu.memory_space<vmem>>, %arg5: memref<1x32xf32, #tpu.memory_space<vmem>>, %arg6: memref<32x128xf32, #tpu.memory_space<vmem>>, %arg7: memref<1x128xf32, #tpu.memory_space<vmem>>, %arg8: memref<16x128xf32, #tpu.memory_space<vmem>>) attributes {dimension_semantics = [#tpu.dimension_semantics<parallel>], iteration_bounds = array<i64: 1>, scalar_prefetch = 0 : i64, scratch_operands = 0 : i64, tpu.core_type = #tpu.core_type<tc>, window_params = [{transform_indices = @transform_0, window_bounds = array<i64: 16, 128>}, {pipeline_mode = #tpu.pipeline_mode<synchronous>, transform_indices = @transform_1, window_bounds = array<i64: 128, 512>}, {pipeline_mode = #tpu.pipeline_mode<synchronous>, transform_indices = @transform_2, window_bounds = array<i64: 1, 512>}, {pipeline_mode = #tpu.pipeline_mode<synchronous>, transform_indices = @transform_3, window_bounds = array<i64: 512, 32>}, {pipeline_mode = #tpu.pipeline_mode<synchronous>, transform_indices = @transform_4, window_bounds = array<i64: 1, 32>}, {pipeline_mode = #tpu.pipeline_mode<synchronous>, transform_indices = @transform_5, window_bounds = array<i64: 32, 128>}, {pipeline_mode = #tpu.pipeline_mode<synchronous>, transform_indices = @transform_6, window_bounds = array<i64: 1, 128>}, {transform_indices = @transform_7, window_bounds = array<i64: 16, 128>}]} {
    %c0 = arith.constant 0 : index
    %c0_0 = arith.constant 0 : index
    %0 = vector.load %arg1[%c0, %c0_0] : memref<16x128xf32, #tpu.memory_space<vmem>>, vector<16x128xf32>
    %c0_1 = arith.constant 0 : index
    %c0_2 = arith.constant 0 : index
    %1 = vector.load %arg2[%c0_1, %c0_2] : memref<128x512xf32, #tpu.memory_space<vmem>>, vector<128x512xf32>
    %cst = arith.constant dense<0.000000e+00> : vector<16x512xf32>
    %2 = tpu.matmul %0, %1, %cst {dimension_numbers = #tpu.dot_dimension_numbers<[1], [0], [0], [1], [0, 0, 1, 1], [], []>} : vector<16x128xf32>, vector<128x512xf32>, vector<16x512xf32> -> vector<16x512xf32>
    %c0_3 = arith.constant 0 : index
    %c0_4 = arith.constant 0 : index
    %3 = vector.load %arg3[%c0_3, %c0_4] : memref<1x512xf32, #tpu.memory_space<vmem>>, vector<1x512xf32>
    %4 = vector.broadcast %3 : vector<1x512xf32> to vector<16x512xf32>
    %5 = arith.addf %2, %4 : vector<16x512xf32>
    %cst_5 = arith.constant 0.000000e+00 : f32
    %6 = vector.broadcast %cst_5 : f32 to vector<16x512xf32>
    %7 = arith.maximumf %5, %6 : vector<16x512xf32>
    %c0_6 = arith.constant 0 : index
    %c0_7 = arith.constant 0 : index
    %8 = vector.load %arg4[%c0_6, %c0_7] : memref<512x32xf32, #tpu.memory_space<vmem>>, vector<512x32xf32>
    %cst_8 = arith.constant dense<0.000000e+00> : vector<16x32xf32>
    %9 = tpu.matmul %7, %8, %cst_8 {dimension_numbers = #tpu.dot_dimension_numbers<[1], [0], [0], [1], [0, 0, 1, 1], [], []>} : vector<16x512xf32>, vector<512x32xf32>, vector<16x32xf32> -> vector<16x32xf32>
    %c0_9 = arith.constant 0 : index
    %c0_10 = arith.constant 0 : index
    %10 = vector.load %arg5[%c0_9, %c0_10] : memref<1x32xf32, #tpu.memory_space<vmem>>, vector<1x32xf32>
    %11 = vector.broadcast %10 : vector<1x32xf32> to vector<16x32xf32>
    %12 = arith.addf %9, %11 : vector<16x32xf32>
    %cst_11 = arith.constant 0.000000e+00 : f32
    %13 = vector.broadcast %cst_11 : f32 to vector<16x32xf32>
    %14 = arith.maximumf %12, %13 : vector<16x32xf32>
    %c0_12 = arith.constant 0 : index
    %c0_13 = arith.constant 0 : index
    %15 = vector.load %arg6[%c0_12, %c0_13] : memref<32x128xf32, #tpu.memory_space<vmem>>, vector<32x128xf32>
    %cst_14 = arith.constant dense<0.000000e+00> : vector<16x128xf32>
    %16 = tpu.matmul %14, %15, %cst_14 {dimension_numbers = #tpu.dot_dimension_numbers<[1], [0], [0], [1], [0, 0, 1, 1], [], []>} : vector<16x32xf32>, vector<32x128xf32>, vector<16x128xf32> -> vector<16x128xf32>
    %c0_15 = arith.constant 0 : index
    %c0_16 = arith.constant 0 : index
    %17 = vector.load %arg7[%c0_15, %c0_16] : memref<1x128xf32, #tpu.memory_space<vmem>>, vector<1x128xf32>
    %18 = vector.broadcast %17 : vector<1x128xf32> to vector<16x128xf32>
    %19 = arith.addf %16, %18 : vector<16x128xf32>
    %c0_17 = arith.constant 0 : index
    %c0_18 = arith.constant 0 : index
    %20 = vector.load %arg8[%c0_17, %c0_18] : memref<16x128xf32, #tpu.memory_space<vmem>>, vector<16x128xf32>
    tpu.vector_store %arg8[%c0_17, %c0_18], %19 {strides = array<i32>} : memref<16x128xf32, #tpu.memory_space<vmem>>, vector<16x128xf32>,
    return
  }
  func.func @transform_0(%arg0: i32) -> (i32, i32) {
    %c0_i32 = arith.constant 0 : i32
    %c0_i32_0 = arith.constant 0 : i32
    return %arg0, %c0_i32 : i32, i32
  }
  func.func @transform_1(%arg0: i32) -> (i32, i32) {
    %c0_i32 = arith.constant 0 : i32
    %c0_i32_0 = arith.constant 0 : i32
    %c0_i32_1 = arith.constant 0 : i32
    return %c0_i32, %c0_i32_0 : i32, i32
  }
  func.func @transform_2(%arg0: i32) -> (i32, i32) {
    %c0_i32 = arith.constant 0 : i32
    %c0_i32_0 = arith.constant 0 : i32
    %c0_i32_1 = arith.constant 0 : i32
    return %c0_i32, %c0_i32_0 : i32, i32
  }
  func.func @transform_3(%arg0: i32) -> (i32, i32) {
    %c0_i32 = arith.constant 0 : i32
    %c0_i32_0 = arith.constant 0 : i32
    %c0_i32_1 = arith.constant 0 : i32
    return %c0_i32, %c0_i32_0 : i32, i32
  }
  func.func @transform_4(%arg0: i32) -> (i32, i32) {
    %c0_i32 = arith.constant 0 : i32
    %c0_i32_0 = arith.constant 0 : i32
    %c0_i32_1 = arith.constant 0 : i32
    return %c0_i32, %c0_i32_0 : i32, i32
  }
  func.func @transform_5(%arg0: i32) -> (i32, i32) {
    %c0_i32 = arith.constant 0 : i32
    %c0_i32_0 = arith.constant 0 : i32
    %c0_i32_1 = arith.constant 0 : i32
    return %c0_i32, %c0_i32_0 : i32, i32
  }
  func.func @transform_6(%arg0: i32) -> (i32, i32) {
    %c0_i32 = arith.constant 0 : i32
    %c0_i32_0 = arith.constant 0 : i32
    %c0_i32_1 = arith.constant 0 : i32
    return %c0_i32, %c0_i32_0 : i32, i32
  }
  func.func @transform_7(%arg0: i32) -> (i32, i32) {
    %c0_i32 = arith.constant 0 : i32
    %c0_i32_0 = arith.constant 0 : i32
    return %arg0, %c0_i32 : i32, i32
  }
}

</mosaic_0001>

<llo_original>
// kernel: tpu_custom_call.1
$region0: #{tpu_custom_call.1}
  #allocation0 [shape = 'u32[]', space=smem, size = 0x4, offset = 0x4, fixed_abs, tag = 'smem constant byte address 0x4 - core index']
  #allocation1 [shape = 'u32[72,128]{1,0:T(1,128)}', space=vmem, size = 0x9000, scoped, tag = 'internal scratch']
  %s0 = inlined_call_operand.vmem [shape: f32[16,128], index: 0, kind: input, shape index: {}]
  %s1 = inlined_call_operand.vmem [shape: f32[128,512], index: 1, kind: input, shape index: {}]
  %s2 = inlined_call_operand.vmem [shape: f32[1,512], index: 2, kind: input, shape index: {}]
  %s3 = inlined_call_operand.vmem [shape: f32[512,32], index: 3, kind: input, shape index: {}]
  %s4 = inlined_call_operand.vmem [shape: f32[1,32], index: 4, kind: input, shape index: {}]
  %s5 = inlined_call_operand.vmem [shape: f32[32,128], index: 5, kind: input, shape index: {}]
  %s6 = inlined_call_operand.vmem [shape: f32[1,128], index: 6, kind: input, shape index: {}]
  %s7 = inlined_call_operand.hbm [shape: f32[16,128], index: 7, kind: output, shape index: {}]
  %s8 = sld [smem:[#allocation0]]
  $region38: #{tpu_custom_call.1} parent=0
    _
  %s10 = ssub.s32 1, %s8
  %s11 = scalar_select 0, %s10, %s8
  $region1: #{tpu_custom_call.1} parent=0
    #allocation2 [shape = 'u8[8192]{0}', space=vmem, size = 0x2000, scoped, tag = 'output window, operand 0, single buffered']
    #allocation3 [shape = 's32[1]{0}', space=sflag, size = 0x4, scoped, tag = 'scoped memory for tpu_custom_call.1']
    %12 = vsyncpa [#allocation3], 0
    // Predicated region
    $region2: #{tpu_custom_call.1} parent=1 // pred_check
      _
    $region3: #{tpu_custom_call.1} parent=1 // pred_check_branch
      %14 = sbr.rel (0) target = $region5
    $region4: #{tpu_custom_call.1} parent=1 // pred_region
      _
    $region5: #{tpu_custom_call.1} parent=1 // pred_fallthru
      _
    // Predicated region
    $region6: #{tpu_custom_call.1} parent=1 // pred_check
      _
    $region7: #{tpu_custom_call.1} parent=1 // pred_check_branch
      %16 = sbr.rel (0) target = $region9
    $region8: #{tpu_custom_call.1} parent=1 // pred_region
      _
    $region9: #{tpu_custom_call.1} parent=1 // pred_fallthru
      _
    // Predicated region
    $region10: #{tpu_custom_call.1} parent=1 // pred_check
      _
    $region11: #{tpu_custom_call.1} parent=1 // pred_check_branch
      %18 = sbr.rel (0) target = $region13
    $region12: #{tpu_custom_call.1} parent=1 // pred_region
      _
    $region13: #{tpu_custom_call.1} parent=1 // pred_fallthru
      _
    // Predicated region
    $region14: #{tpu_custom_call.1} parent=1 // pred_check
      _
    $region15: #{tpu_custom_call.1} parent=1 // pred_check_branch
      %20 = sbr.rel (0) target = $region17
    $region16: #{tpu_custom_call.1} parent=1 // pred_region
      _
    $region17: #{tpu_custom_call.1} parent=1 // pred_fallthru
      _
    // Predicated region
    $region18: #{tpu_custom_call.1} parent=1 // pred_check
      _
    $region19: #{tpu_custom_call.1} parent=1 // pred_check_branch
      %22 = sbr.rel (0) target = $region21
    $region20: #{tpu_custom_call.1} parent=1 // pred_region
      _
    $region21: #{tpu_custom_call.1} parent=1 // pred_fallthru
      _
    // Predicated region
    $region22: #{tpu_custom_call.1} parent=1 // pred_check
      _
    $region23: #{tpu_custom_call.1} parent=1 // pred_check_branch
      %24 = sbr.rel (0) target = $region25
    $region24: #{tpu_custom_call.1} parent=1 // pred_region
      _
    $region25: #{tpu_custom_call.1} parent=1 // pred_fallthru
      _
    // Predicated region
    $region26: #{tpu_custom_call.1} parent=1 // pred_check
      _
    $region27: #{tpu_custom_call.1} parent=1 // pred_check_branch
      %26 = sbr.rel (0) target = $region29
    $region28: #{tpu_custom_call.1} parent=1 // pred_region
      _
    $region29: #{tpu_custom_call.1} parent=1 // pred_fallthru
      _
    %v27 = vld [vmem:[%s0] sm:$0xff]
    %v28 = vld [vmem:[%s0 + $0x8] sm:$0xff]
    %v29 = vld [vmem:[%s1] sm:$0xff]
    %v30 = vld [vmem:[%s1 + $0x8] sm:$0xff]
    %v31 = vld [vmem:[%s1 + $0x10] sm:$0xff]
    %v32 = vld [vmem:[%s1 + $0x18] sm:$0xff]
    %v33 = vld [vmem:[%s1 + $0x20] sm:$0xff]
    %v34 = vld [vmem:[%s1 + $0x28] sm:$0xff]
    %v35 = vld [vmem:[%s1 + $0x30] sm:$0xff]
    %v36 = vld [vmem:[%s1 + $0x38] sm:$0xff]
    %v37 = vld [vmem:[%s1 + $0x40] sm:$0xff]
    %v38 = vld [vmem:[%s1 + $0x48] sm:$0xff]
    %v39 = vld [vmem:[%s1 + $0x50] sm:$0xff]
    %v40 = vld [vmem:[%s1 + $0x58] sm:$0xff]
    %v41 = vld [vmem:[%s1 + $0x60] sm:$0xff]
    %v42 = vld [vmem:[%s1 + $0x68] sm:$0xff]
    %v43 = vld [vmem:[%s1 + $0x70] sm:$0xff]
    %v44 = vld [vmem:[%s1 + $0x78] sm:$0xff]
    %v45 = vld [vmem:[%s1 + $0x80] sm:$0xff]
    %v46 = vld [vmem:[%s1 + $0x88] sm:$0xff]
    %v47 = vld [vmem:[%s1 + $0x90] sm:$0xff]
    %v48 = vld [vmem:[%s1 + $0x98] sm:$0xff]
    %v49 = vld [vmem:[%s1 + $0xa0] sm:$0xff]
    %v50 = vld [vmem:[%s1 + $0xa8] sm:$0xff]
    %v51 = vld [vmem:[%s1 + $0xb0] sm:$0xff]
    %v52 = vld [vmem:[%s1 + $0xb8] sm:$0xff]
    %v53 = vld [vmem:[%s1 + $0xc0] sm:$0xff]
    %v54 = vld [vmem:[%s1 + $0xc8] sm:$0xff]
    %v55 = vld [vmem:[%s1 + $0xd0] sm:$0xff]
    %v56 = vld [vmem:[%s1 + $0xd8] sm:$0xff]
    %v57 = vld [vmem:[%s1 + $0xe0] sm:$0xff]
    %v58 = vld [vmem:[%s1 + $0xe8] sm:$0xff]
    %v59 = vld [vmem:[%s1 + $0xf0] sm:$0xff]
    %v60 = vld [vmem:[%s1 + $0xf8] sm:$0xff]
    %v61 = vld [vmem:[%s1 + $0x100] sm:$0xff]
    %v62 = vld [vmem:[%s1 + $0x108] sm:$0xff]
    %v63 = vld [vmem:[%s1 + $0x110] sm:$0xff]
    %v64 = vld [vmem:[%s1 + $0x118] sm:$0xff]
    %v65 = vld [vmem:[%s1 + $0x120] sm:$0xff]
    %v66 = vld [vmem:[%s1 + $0x128] sm:$0xff]
    %v67 = vld [vmem:[%s1 + $0x130] sm:$0xff]
    %v68 = vld [vmem:[%s1 + $0x138] sm:$0xff]
    %v69 = vld [vmem:[%s1 + $0x140] sm:$0xff]
    %v70 = vld [vmem:[%s1 + $0x148] sm:$0xff]
    %v71 = vld [vmem:[%s1 + $0x150] sm:$0xff]
    %v72 = vld [vmem:[%s1 + $0x158] sm:$0xff]
    %v73 = vld [vmem:[%s1 + $0x160] sm:$0xff]
    %v74 = vld [vmem:[%s1 + $0x168] sm:$0xff]
    %v75 = vld [vmem:[%s1 + $0x170] sm:$0xff]
    %v76 = vld [vmem:[%s1 + $0x178] sm:$0xff]
    %v77 = vld [vmem:[%s1 + $0x180] sm:$0xff]
    %v78 = vld [vmem:[%s1 + $0x188] sm:$0xff]
    %v79 = vld [vmem:[%s1 + $0x190] sm:$0xff]
    %v80 = vld [vmem:[%s1 + $0x198] sm:$0xff]
    %v81 = vld [vmem:[%s1 + $0x1a0] sm:$0xff]
    %v82 = vld [vmem:[%s1 + $0x1a8] sm:$0xff]
    %v83 = vld [vmem:[%s1 + $0x1b0] sm:$0xff]
    %v84 = vld [vmem:[%s1 + $0x1b8] sm:$0xff]
    %v85 = vld [vmem:[%s1 + $0x1c0] sm:$0xff]
    %v86 = vld [vmem:[%s1 + $0x1c8] sm:$0xff]
    %v87 = vld [vmem:[%s1 + $0x1d0] sm:$0xff]
    %v88 = vld [vmem:[%s1 + $0x1d8] sm:$0xff]
    %v89 = vld [vmem:[%s1 + $0x1e0] sm:$0xff]
    %v90 = vld [vmem:[%s1 + $0x1e8] sm:$0xff]
    %v91 = vld [vmem:[%s1 + $0x1f0] sm:$0xff]
    %v92 = vld [vmem:[%s1 + $0x1f8] sm:$0xff]
    %v93 = vld [vmem:[%s2] sm:$0xf]
    %v95 = vperm.slane %v93, 0
    %v96 = vperm.slane %v93, 1
    %v97 = vperm.slane %v93, 2
    %v98 = vperm.slane %v93, 3
    %103 = vmatpush.msra.mxu0 %v89
    %104 = vmatpush.msra.mxu0 %v85
    %105 = vmatpush.msra.mxu0 %v81
    %106 = vmatpush.msra.mxu0 %v77
    %107 = vmatpush.msra.mxu0 %v73
    %108 = vmatpush.msra.mxu0 %v69
    %109 = vmatpush.msra.mxu0 %v65
    %110 = vmatpush.msra.mxu0 %v61
    %111 = vmatpush.msra.mxu0 %v57
    %112 = vmatpush.msra.mxu0 %v53
    %113 = vmatpush.msra.mxu0 %v49
    %114 = vmatpush.msra.mxu0 %v45
    %115 = vmatpush.msra.mxu0 %v41
    %116 = vmatpush.msra.mxu0 %v37
    %117 = vmatpush.msra.mxu0 %v33
    %118 = vmatpush.msra.mxu0 %v29
    %119 = vmatmul.f32.gmra.mxu0 %v27
    %v120 = vpop.f32.mrf.mxu0
    %v121 = vadd.f32 %v95, %v120
    %122 = vmatmul.f32.gmra.mxu0 %v28
    %v123 = vpop.f32.mrf.mxu0
    %v124 = vadd.f32 %v95, %v123
    %125 = vdwg.mxu0
    %126 = vmatpush.msra.mxu0 %v90
    %127 = vmatpush.msra.mxu0 %v86
    %128 = vmatpush.msra.mxu0 %v82
    %129 = vmatpush.msra.mxu0 %v78
    %130 = vmatpush.msra.mxu0 %v74
    %131 = vmatpush.msra.mxu0 %v70
    %132 = vmatpush.msra.mxu0 %v66
    %133 = vmatpush.msra.mxu0 %v62
    %134 = vmatpush.msra.mxu0 %v58
    %135 = vmatpush.msra.mxu0 %v54
    %136 = vmatpush.msra.mxu0 %v50
    %137 = vmatpush.msra.mxu0 %v46
    %138 = vmatpush.msra.mxu0 %v42
    %139 = vmatpush.msra.mxu0 %v38
    %140 = vmatpush.msra.mxu0 %v34
    %141 = vmatpush.msra.mxu0 %v30
    %142 = vmatmul.f32.gmra.mxu0 %v27
    %v143 = vpop.f32.mrf.mxu0
    %v144 = vadd.f32 %v96, %v143
    %145 = vmatmul.f32.gmra.mxu0 %v28
    %v146 = vpop.f32.mrf.mxu0
    %v147 = vadd.f32 %v96, %v146
    %148 = vdwg.mxu0
    %149 = vmatpush.msra.mxu0 %v91
    %150 = vmatpush.msra.mxu0 %v87
    %151 = vmatpush.msra.mxu0 %v83
    %152 = vmatpush.msra.mxu0 %v79
    %153 = vmatpush.msra.mxu0 %v75
    %154 = vmatpush.msra.mxu0 %v71
    %155 = vmatpush.msra.mxu0 %v67
    %156 = vmatpush.msra.mxu0 %v63
    %157 = vmatpush.msra.mxu0 %v59
    %158 = vmatpush.msra.mxu0 %v55
    %159 = vmatpush.msra.mxu0 %v51
    %160 = vmatpush.msra.mxu0 %v47
    %161 = vmatpush.msra.mxu0 %v43
    %162 = vmatpush.msra.mxu0 %v39
    %163 = vmatpush.msra.mxu0 %v35
    %164 = vmatpush.msra.mxu0 %v31
    %165 = vmatmul.f32.gmra.mxu0 %v27
    %v166 = vpop.f32.mrf.mxu0
    %v167 = vadd.f32 %v97, %v166
    %168 = vmatmul.f32.gmra.mxu0 %v28
    %v169 = vpop.f32.mrf.mxu0
    %v170 = vadd.f32 %v97, %v169
    %171 = vdwg.mxu0
    %172 = vmatpush.msra.mxu0 %v92
    %173 = vmatpush.msra.mxu0 %v88
    %174 = vmatpush.msra.mxu0 %v84
    %175 = vmatpush.msra.mxu0 %v80
    %176 = vmatpush.msra.mxu0 %v76
    %177 = vmatpush.msra.mxu0 %v72
    %178 = vmatpush.msra.mxu0 %v68
    %179 = vmatpush.msra.mxu0 %v64
    %180 = vmatpush.msra.mxu0 %v60
    %181 = vmatpush.msra.mxu0 %v56
    %182 = vmatpush.msra.mxu0 %v52
    %183 = vmatpush.msra.mxu0 %v48
    %184 = vmatpush.msra.mxu0 %v44
    %185 = vmatpush.msra.mxu0 %v40
    %186 = vmatpush.msra.mxu0 %v36
    %187 = vmatpush.msra.mxu0 %v32
    %188 = vmatmul.f32.gmra.mxu0 %v27
    %v189 = vpop.f32.mrf.mxu0
    %v190 = vadd.f32 %v98, %v189
    %191 = vmatmul.f32.gmra.mxu0 %v28
    %v192 = vpop.f32.mrf.mxu0
    %v193 = vadd.f32 %v98, %v192
    %194 = vdwg.mxu0
    %v195 = vmax.f32 %v121, 0.0
    %v196 = vmax.f32 %v144, 0.0
    %v197 = vmax.f32 %v167, 0.0
    %v198 = vmax.f32 %v190, 0.0
    %v199 = vmax.f32 %v124, 0.0
    %v200 = vmax.f32 %v147, 0.0
    %v201 = vmax.f32 %v170, 0.0
    %v202 = vmax.f32 %v193, 0.0
    %v203 = vld [vmem:[%s3] sm:$0xff]
    %v204 = vld [vmem:[%s3 + $0x8] sm:$0xff]
    %v205 = vld [vmem:[%s3 + $0x10] sm:$0xff]
    %v206 = vld [vmem:[%s3 + $0x18] sm:$0xff]
    %v207 = vld [vmem:[%s3 + $0x20] sm:$0xff]
    %v208 = vld [vmem:[%s3 + $0x28] sm:$0xff]
    %v209 = vld [vmem:[%s3 + $0x30] sm:$0xff]
    %v210 = vld [vmem:[%s3 + $0x38] sm:$0xff]
    %v211 = vld [vmem:[%s3 + $0x40] sm:$0xff]
    %v212 = vld [vmem:[%s3 + $0x48] sm:$0xff]
    %v213 = vld [vmem:[%s3 + $0x50] sm:$0xff]
    %v214 = vld [vmem:[%s3 + $0x58] sm:$0xff]
    %v215 = vld [vmem:[%s3 + $0x60] sm:$0xff]
    %v216 = vld [vmem:[%s3 + $0x68] sm:$0xff]
    %v217 = vld [vmem:[%s3 + $0x70] sm:$0xff]
    %v218 = vld [vmem:[%s3 + $0x78] sm:$0xff]
    %v219 = vld [vmem:[%s3 + $0x80] sm:$0xff]
    %v220 = vld [vmem:[%s3 + $0x88] sm:$0xff]
    %v221 = vld [vmem:[%s3 + $0x90] sm:$0xff]
    %v222 = vld [vmem:[%s3 + $0x98] sm:$0xff]
    %v223 = vld [vmem:[%s3 + $0xa0] sm:$0xff]
    %v224 = vld [vmem:[%s3 + $0xa8] sm:$0xff]
    %v225 = vld [vmem:[%s3 + $0xb0] sm:$0xff]
    %v226 = vld [vmem:[%s3 + $0xb8] sm:$0xff]
    %v227 = vld [vmem:[%s3 + $0xc0] sm:$0xff]
    %v228 = vld [vmem:[%s3 + $0xc8] sm:$0xff]
    %v229 = vld [vmem:[%s3 + $0xd0] sm:$0xff]
    %v230 = vld [vmem:[%s3 + $0xd8] sm:$0xff]
    %v231 = vld [vmem:[%s3 + $0xe0] sm:$0xff]
    %v232 = vld [vmem:[%s3 + $0xe8] sm:$0xff]
    %v233 = vld [vmem:[%s3 + $0xf0] sm:$0xff]
    %v234 = vld [vmem:[%s3 + $0xf8] sm:$0xff]
    %v235 = vld [vmem:[%s3 + $0x100] sm:$0xff]
    %v236 = vld [vmem:[%s3 + $0x108] sm:$0xff]
    %v237 = vld [vmem:[%s3 + $0x110] sm:$0xff]
    %v238 = vld [vmem:[%s3 + $0x118] sm:$0xff]
    %v239 = vld [vmem:[%s3 + $0x120] sm:$0xff]
    %v240 = vld [vmem:[%s3 + $0x128] sm:$0xff]
    %v241 = vld [vmem:[%s3 + $0x130] sm:$0xff]
    %v242 = vld [vmem:[%s3 + $0x138] sm:$0xff]
    %v243 = vld [vmem:[%s3 + $0x140] sm:$0xff]
    %v244 = vld [vmem:[%s3 + $0x148] sm:$0xff]
    %v245 = vld [vmem:[%s3 + $0x150] sm:$0xff]
    %v246 = vld [vmem:[%s3 + $0x158] sm:$0xff]
    %v247 = vld [vmem:[%s3 + $0x160] sm:$0xff]
    %v248 = vld [vmem:[%s3 + $0x168] sm:$0xff]
    %v249 = vld [vmem:[%s3 + $0x170] sm:$0xff]
    %v250 = vld [vmem:[%s3 + $0x178] sm:$0xff]
    %v251 = vld [vmem:[%s3 + $0x180] sm:$0xff]
    %v252 = vld [vmem:[%s3 + $0x188] sm:$0xff]
    %v253 = vld [vmem:[%s3 + $0x190] sm:$0xff]
    %v254 = vld [vmem:[%s3 + $0x198] sm:$0xff]
    %v255 = vld [vmem:[%s3 + $0x1a0] sm:$0xff]
    %v256 = vld [vmem:[%s3 + $0x1a8] sm:$0xff]
    %v257 = vld [vmem:[%s3 + $0x1b0] sm:$0xff]
    %v258 = vld [vmem:[%s3 + $0x1b8] sm:$0xff]
    %v259 = vld [vmem:[%s3 + $0x1c0] sm:$0xff]
    %v260 = vld [vmem:[%s3 + $0x1c8] sm:$0xff]
    %v261 = vld [vmem:[%s3 + $0x1d0] sm:$0xff]
    %v262 = vld [vmem:[%s3 + $0x1d8] sm:$0xff]
    %v263 = vld [vmem:[%s3 + $0x1e0] sm:$0xff]
    %v264 = vld [vmem:[%s3 + $0x1e8] sm:$0xff]
    %v265 = vld [vmem:[%s3 + $0x1f0] sm:$0xff]
    %v266 = vld [vmem:[%s3 + $0x1f8] sm:$0xff]
    %v267 = vld [vmem:[%s4] sm:$0x1]
    %v269 = vperm.slane %v267, 0
    %271 = vmatpush.msra.mxu0 %v218
    %272 = vmatpush.msra.mxu0 %v217
    %273 = vmatpush.msra.mxu0 %v216
    %274 = vmatpush.msra.mxu0 %v215
    %275 = vmatpush.msra.mxu0 %v214
    %276 = vmatpush.msra.mxu0 %v213
    %277 = vmatpush.msra.mxu0 %v212
    %278 = vmatpush.msra.mxu0 %v211
    %279 = vmatpush.msra.mxu0 %v210
    %280 = vmatpush.msra.mxu0 %v209
    %281 = vmatpush.msra.mxu0 %v208
    %282 = vmatpush.msra.mxu0 %v207
    %283 = vmatpush.msra.mxu0 %v206
    %284 = vmatpush.msra.mxu0 %v205
    %285 = vmatpush.msra.mxu0 %v204
    %286 = vmatpush.msra.mxu0 %v203
    %287 = vmatmul.f32.gmra.mxu0 %v195
    %v288 = vpop.f32.mrf.mxu0
    %v289 = vadd.f32 %v269, %v288
    %290 = vmatmul.f32.gmra.mxu0 %v199
    %v291 = vpop.f32.mrf.mxu0
    %v292 = vadd.f32 %v269, %v291
    %293 = vdwg.mxu0
    %294 = vmatpush.msra.mxu0 %v234
    %295 = vmatpush.msra.mxu0 %v233
    %296 = vmatpush.msra.mxu0 %v232
    %297 = vmatpush.msra.mxu0 %v231
    %298 = vmatpush.msra.mxu0 %v230
    %299 = vmatpush.msra.mxu0 %v229
    %300 = vmatpush.msra.mxu0 %v228
    %301 = vmatpush.msra.mxu0 %v227
    %302 = vmatpush.msra.mxu0 %v226
    %303 = vmatpush.msra.mxu0 %v225
    %304 = vmatpush.msra.mxu0 %v224
    %305 = vmatpush.msra.mxu0 %v223
    %306 = vmatpush.msra.mxu0 %v222
    %307 = vmatpush.msra.mxu0 %v221
    %308 = vmatpush.msra.mxu0 %v220
    %309 = vmatpush.msra.mxu0 %v219
    %310 = vmatmul.f32.gmra.mxu0 %v196
    %v311 = vpop.f32.mrf.mxu0
    %v312 = vadd.f32 %v289, %v311
    %313 = vmatmul.f32.gmra.mxu0 %v200
    %v314 = vpop.f32.mrf.mxu0
    %v315 = vadd.f32 %v292, %v314
    %316 = vdwg.mxu0
    %317 = vmatpush.msra.mxu0 %v250
    %318 = vmatpush.msra.mxu0 %v249
    %319 = vmatpush.msra.mxu0 %v248
    %320 = vmatpush.msra.mxu0 %v247
    %321 = vmatpush.msra.mxu0 %v246
    %322 = vmatpush.msra.mxu0 %v245
    %323 = vmatpush.msra.mxu0 %v244
    %324 = vmatpush.msra.mxu0 %v243
    %325 = vmatpush.msra.mxu0 %v242
    %326 = vmatpush.msra.mxu0 %v241
    %327 = vmatpush.msra.mxu0 %v240
    %328 = vmatpush.msra.mxu0 %v239
    %329 = vmatpush.msra.mxu0 %v238
    %330 = vmatpush.msra.mxu0 %v237
    %331 = vmatpush.msra.mxu0 %v236
    %332 = vmatpush.msra.mxu0 %v235
    %333 = vmatmul.f32.gmra.mxu0 %v197
    %v334 = vpop.f32.mrf.mxu0
    %v335 = vadd.f32 %v312, %v334
    %336 = vmatmul.f32.gmra.mxu0 %v201
    %v337 = vpop.f32.mrf.mxu0
    %v338 = vadd.f32 %v315, %v337
    %339 = vdwg.mxu0
    %340 = vmatpush.msra.mxu0 %v266
    %341 = vmatpush.msra.mxu0 %v265
    %342 = vmatpush.msra.mxu0 %v264
    %343 = vmatpush.msra.mxu0 %v263
    %344 = vmatpush.msra.mxu0 %v262
    %345 = vmatpush.msra.mxu0 %v261
    %346 = vmatpush.msra.mxu0 %v260
    %347 = vmatpush.msra.mxu0 %v259
    %348 = vmatpush.msra.mxu0 %v258
    %349 = vmatpush.msra.mxu0 %v257
    %350 = vmatpush.msra.mxu0 %v256
    %351 = vmatpush.msra.mxu0 %v255
    %352 = vmatpush.msra.mxu0 %v254
    %353 = vmatpush.msra.mxu0 %v253
    %354 = vmatpush.msra.mxu0 %v252
    %355 = vmatpush.msra.mxu0 %v251
    %356 = vmatmul.f32.gmra.mxu0 %v198
    %v357 = vpop.f32.mrf.mxu0
    %v358 = vadd.f32 %v335, %v357
    %359 = vmatmul.f32.gmra.mxu0 %v202
    %v360 = vpop.f32.mrf.mxu0
    %v361 = vadd.f32 %v338, %v360
    %362 = vdwg.mxu0
    %v363 = vmax.f32 %v358, 0.0
    %v364 = vmax.f32 %v361, 0.0
    %v365 = vld [vmem:[%s5] sm:$0xff]
    %v366 = vld [vmem:[%s5 + $0x8] sm:$0xff]
    %v367 = vld [vmem:[%s5 + $0x10] sm:$0xff]
    %v368 = vld [vmem:[%s5 + $0x18] sm:$0xff]
    %v369 = vld [vmem:[%s6] sm:$0x1]
    %v371 = vperm.slane %v369, 0
    %vm373 = vcmask 261120
    %v375 = vsel %vm373, %v363, 0
    %v378 = vsel %vm373, %v364, 0
    %380 = vmatpush.msra.mxu0 0.0
    %381 = vmatpush.msra.mxu0 0.0
    %382 = vmatpush.msra.mxu0 0.0
    %383 = vmatpush.msra.mxu0 0.0
    %384 = vmatpush.msra.mxu0 0.0
    %385 = vmatpush.msra.mxu0 0.0
    %386 = vmatpush.msra.mxu0 0.0
    %387 = vmatpush.msra.mxu0 0.0
    %388 = vmatpush.msra.mxu0 0.0
    %389 = vmatpush.msra.mxu0 0.0
    %390 = vmatpush.msra.mxu0 0.0
    %391 = vmatpush.msra.mxu0 0.0
    %392 = vmatpush.msra.mxu0 %v368
    %393 = vmatpush.msra.mxu0 %v367
    %394 = vmatpush.msra.mxu0 %v366
    %395 = vmatpush.msra.mxu0 %v365
    %396 = vmatmul.f32.gmra.mxu0 %v375
    %v397 = vpop.f32.mrf.mxu0
    %v398 = vadd.f32 %v371, %v397
    %399 = vmatmul.f32.gmra.mxu0 %v378
    %v400 = vpop.f32.mrf.mxu0
    %v401 = vadd.f32 %v371, %v400
    %402 = vdwg.mxu0
    %403 = vst [vmem:[#allocation2] sm:$0xff] %v398
    %404 = vst [vmem:[#allocation2 + $0x8] sm:$0xff] %v401
    // Predicated region
    $region30: #{tpu_custom_call.1} parent=1 // pred_check
      _
    $region31: #{tpu_custom_call.1} parent=1 // pred_check_branch
      %406 = sbr.rel (0) target = $region33
    $region32: #{tpu_custom_call.1} parent=1 // pred_region
      %408 = vsyncadd [#allocation3], 0
      %s409 = sshll.u32 [#allocation2], 4
      %s410 = int_to_ptr.vmem [resolvable:$true] %s409
      %s411 = sshll.u32 %s7, 4
      %s412 = int_to_ptr.hbm [resolvable:$true] %s411
      %417 = dma.vmem_to_hbm [thread:$0]  %s410, 256, %s412, [#allocation3], 128, 128, 8
    $region33: #{tpu_custom_call.1} parent=1 // pred_fallthru
      _
    // Predicated region
    $region34: #{tpu_custom_call.1} parent=1 // pred_check
      _
    $region35: #{tpu_custom_call.1} parent=1 // pred_check_branch
      %419 = sbr.rel (0) target = $region37
    $region36: #{tpu_custom_call.1} parent=1 // pred_region
      %421 = dma.done [#allocation3], 256
    $region37: #{tpu_custom_call.1} parent=1 // pred_fallthru
      _
    %422 = vsyncpa [#allocation3], 1

</llo_original>
